<compile_context>
chip_gen: v5e
topology: v5e:2x2
jax: 0.10.0
libtpu: 0.0.40
codegen_flags: <defaults>
</compile_context>

<pallas_src>
import math

import jax
import jax.numpy as jnp
from jax.experimental import pallas as pl
from jax.experimental.pallas import tpu as pltpu


def _leaky_relu(x, negative_slope=0.4):
    # Equivalent to where(x>0, x, a*x) for 0 < a < 1, but a single vmax per vreg.
    return jnp.maximum(x, negative_slope * x)


def make_discriminator_kernel(out_dims):
    d1, d2, d3, d4 = out_dims

    def kernel(x_ref, w1_ref, w2_ref, w3_ref, w4_ref, b_ref, o_ref):
        # Layer 1: Linear + LeakyReLU(0.4)
        h = jnp.dot(x_ref[...], w1_ref[...], preferred_element_type=jnp.float32)
        h = _leaky_relu(h + b_ref[0:1, :d1])
        # Layer 2: Linear + LeakyReLU(0.4)
        h = jnp.dot(h, w2_ref[...], preferred_element_type=jnp.float32)
        h = _leaky_relu(h + b_ref[1:2, :d2])
        # Layer 3: Linear + LeakyReLU(0.4)
        h = jnp.dot(h, w3_ref[...], preferred_element_type=jnp.float32)
        h = _leaky_relu(h + b_ref[2:3, :d3])
        # Layer 4: Linear + Sigmoid
        h = jnp.dot(h, w4_ref[...], preferred_element_type=jnp.float32)
        h = h + b_ref[3:4, :d4]
        # sigmoid(h) == 0.5 * (tanh(0.5*h) + 1): one EUP op, no divide.
        o_ref[...] = (0.5 * (jnp.tanh(0.5 * h) + 1.0)).astype(o_ref.dtype)

    return kernel


def discriminator_forward(x, params, *, block_batch=1024):
    """x: [batch, input_size] (f32 or bf16). params: list of 4 (W [in,out], b [1,out])."""
    batch, in_features = x.shape
    out_dims = tuple(int(w.shape[1]) for w, _ in params)
    out_features = out_dims[-1]

    # Batch tile: big enough to amortize the ~0.35 us/step grid overhead, but keep at
    # least 2 tiles when the batch allows it so v7x's two TensorCores both get work.
    tb = min(block_batch, batch)
    if batch > 8 and pl.cdiv(batch, tb) < 2:
        tb = pl.cdiv(batch, 2)
    tb = max(8, ((tb + 7) // 8) * 8)          # sublane-aligned batch tile
    grid = (pl.cdiv(batch, tb),)              # partial last block is masked by Pallas

    # Pack the four biases into one lane-padded buffer (stays VMEM-resident).
    bias_width = ((max(out_dims) + 127) // 128) * 128
    b_pack = jnp.zeros((len(params), bias_width), jnp.float32)
    for i, (_, b) in enumerate(params):
        b_pack = b_pack.at[i, : b.shape[-1]].set(b.reshape(-1).astype(jnp.float32))

    weight_args = [w for w, _ in params]
    weight_specs = [pl.BlockSpec(w.shape, lambda i: (0, 0)) for w in weight_args]
    bias_spec = pl.BlockSpec(b_pack.shape, lambda i: (0, 0))

    x_spec = pl.BlockSpec((tb, in_features), lambda i: (i, 0))
    out_spec = pl.BlockSpec((tb, out_features), lambda i: (i, 0))

    kernel = make_discriminator_kernel(out_dims)

    return pl.pallas_call(
        kernel,
        out_shape=jax.ShapeDtypeStruct((batch, out_features), jnp.float32),
        grid=grid,
        in_specs=[x_spec] + weight_specs + [bias_spec],
        out_specs=out_spec,
        compiler_params=pltpu.CompilerParams(
            dimension_semantics=("parallel",)),   # v7x: batch tiles split over 2 TCs
    )(x, *weight_args, b_pack)


def xavier_uniform(key, fan_in, fan_out):
    # Matches torch.nn.init.xavier_uniform_ for a Linear weight of shape (out, in);
    # we directly build the transposed [in, out] layout.
    bound = math.sqrt(6.0 / (fan_in + fan_out))
    return jax.random.uniform(key, (fan_in, fan_out), jnp.float32,
                              minval=-bound, maxval=bound)


def init_discriminator_params(key, input_size, hidden_size, output_size):
    dims_in = [input_size, hidden_size[0], hidden_size[1], hidden_size[2]]
    dims_out = [hidden_size[0], hidden_size[1], hidden_size[2], output_size]
    params = []
    keys = jax.random.split(key, 4)
    for k, fi, fo in zip(keys, dims_in, dims_out):
        w = xavier_uniform(k, fi, fo)
        b = jnp.zeros((1, fo), jnp.float32)  # nn.init.constant_(bias, 0.0)
        params.append((w, b))
    return params


def discriminator_reference(x, params):
    """Plain-JAX f32 reference for sanity checking."""
    h = x
    n = len(params)
    for i, (w, b) in enumerate(params):
        h = h @ w + b
        if i < n - 1:
            h = jnp.where(h > 0, h, 0.4 * h)
        else:
            h = jax.nn.sigmoid(h)
    return h


if __name__ == "__main__":
    key = jax.random.PRNGKey(0)
    k_x, k_p, k_b = jax.random.split(key, 3)

    # Small shapes consistent with the module's __init__ signature.
    input_size = 32
    hidden_size = [64, 48, 32]
    output_size = 16
    batch = 300   # deliberately not tile-aligned: exercises the masked partial block

    params = init_discriminator_params(k_p, input_size, hidden_size, output_size)
    # The torch init sets biases to 0.0; perturb them here so the bias-add path is
    # actually exercised by the numerical check.
    params = [(w, 0.1 * jax.random.normal(kk, b.shape, jnp.float32))
              for (w, b), kk in zip(params, jax.random.split(k_b, 4))]

    x = jax.random.normal(k_x, (batch, input_size), jnp.float32)

    out = jax.block_until_ready(discriminator_forward(x, params))
    ref = discriminator_reference(x, params)

    assert out.shape == (batch, output_size)
    max_err = float(jnp.max(jnp.abs(out - ref)))
    # All-f32 path; tolerance covers possible bf16-pass MXU rounding differences.
    assert jnp.allclose(out, ref, atol=1e-2, rtol=1e-2), max_err

    print("KERNEL_OK")
</pallas_src>

<mosaic_0001>
module attributes {stable_mosaic.version = 11 : i64} {
  func.func @kernel(%arg0: i32, %arg1: memref<152x32xf32, #tpu.memory_space<vmem>>, %arg2: memref<32x64xf32, #tpu.memory_space<vmem>>, %arg3: memref<64x48xf32, #tpu.memory_space<vmem>>, %arg4: memref<48x32xf32, #tpu.memory_space<vmem>>, %arg5: memref<32x16xf32, #tpu.memory_space<vmem>>, %arg6: memref<4x128xf32, #tpu.memory_space<vmem>>, %arg7: memref<152x16xf32, #tpu.memory_space<vmem>>) attributes {dimension_semantics = [#tpu.dimension_semantics<parallel>], iteration_bounds = array<i64: 2>, scalar_prefetch = 0 : i64, scratch_operands = 0 : i64, tpu.core_type = #tpu.core_type<tc>, window_params = [{transform_indices = @transform_0, window_bounds = array<i64: 152, 32>}, {pipeline_mode = #tpu.pipeline_mode<synchronous>, transform_indices = @transform_1, window_bounds = array<i64: 32, 64>}, {pipeline_mode = #tpu.pipeline_mode<synchronous>, transform_indices = @transform_2, window_bounds = array<i64: 64, 48>}, {pipeline_mode = #tpu.pipeline_mode<synchronous>, transform_indices = @transform_3, window_bounds = array<i64: 48, 32>}, {pipeline_mode = #tpu.pipeline_mode<synchronous>, transform_indices = @transform_4, window_bounds = array<i64: 32, 16>}, {pipeline_mode = #tpu.pipeline_mode<synchronous>, transform_indices = @transform_5, window_bounds = array<i64: 4, 128>}, {transform_indices = @transform_6, window_bounds = array<i64: 152, 16>}]} {
    %c0 = arith.constant 0 : index
    %c0_0 = arith.constant 0 : index
    %0 = vector.load %arg1[%c0, %c0_0] : memref<152x32xf32, #tpu.memory_space<vmem>>, vector<152x32xf32>
    %c0_1 = arith.constant 0 : index
    %c0_2 = arith.constant 0 : index
    %1 = vector.load %arg2[%c0_1, %c0_2] : memref<32x64xf32, #tpu.memory_space<vmem>>, vector<32x64xf32>
    %cst = arith.constant dense<0.000000e+00> : vector<152x64xf32>
    %2 = tpu.matmul %0, %1, %cst {dimension_numbers = #tpu.dot_dimension_numbers<[1], [0], [0], [1], [0, 0, 1, 1], [], []>} : vector<152x32xf32>, vector<32x64xf32>, vector<152x64xf32> -> vector<152x64xf32>
    %c0_3 = arith.constant 0 : index
    %c0_4 = arith.constant 0 : index
    %3 = vector.load %arg6[%c0_3, %c0_4] : memref<4x128xf32, #tpu.memory_space<vmem>>, vector<1x64xf32>
    %4 = vector.broadcast %3 : vector<1x64xf32> to vector<152x64xf32>
    %5 = arith.addf %2, %4 : vector<152x64xf32>
    %cst_5 = arith.constant 4.000000e-01 : f32
    %6 = vector.broadcast %cst_5 : f32 to vector<152x64xf32>
    %7 = arith.mulf %6, %5 : vector<152x64xf32>
    %8 = arith.maximumf %5, %7 : vector<152x64xf32>
    %c0_6 = arith.constant 0 : index
    %c0_7 = arith.constant 0 : index
    %9 = vector.load %arg3[%c0_6, %c0_7] : memref<64x48xf32, #tpu.memory_space<vmem>>, vector<64x48xf32>
    %cst_8 = arith.constant dense<0.000000e+00> : vector<152x48xf32>
    %10 = tpu.matmul %8, %9, %cst_8 {dimension_numbers = #tpu.dot_dimension_numbers<[1], [0], [0], [1], [0, 0, 1, 1], [], []>} : vector<152x64xf32>, vector<64x48xf32>, vector<152x48xf32> -> vector<152x48xf32>
    %c1 = arith.constant 1 : index
    %c0_9 = arith.constant 0 : index
    %11 = vector.load %arg6[%c1, %c0_9] : memref<4x128xf32, #tpu.memory_space<vmem>>, vector<1x48xf32>
    %12 = vector.broadcast %11 : vector<1x48xf32> to vector<152x48xf32>
    %13 = arith.addf %10, %12 : vector<152x48xf32>
    %cst_10 = arith.constant 4.000000e-01 : f32
    %14 = vector.broadcast %cst_10 : f32 to vector<152x48xf32>
    %15 = arith.mulf %14, %13 : vector<152x48xf32>
    %16 = arith.maximumf %13, %15 : vector<152x48xf32>
    %c0_11 = arith.constant 0 : index
    %c0_12 = arith.constant 0 : index
    %17 = vector.load %arg4[%c0_11, %c0_12] : memref<48x32xf32, #tpu.memory_space<vmem>>, vector<48x32xf32>
    %cst_13 = arith.constant dense<0.000000e+00> : vector<152x32xf32>
    %18 = tpu.matmul %16, %17, %cst_13 {dimension_numbers = #tpu.dot_dimension_numbers<[1], [0], [0], [1], [0, 0, 1, 1], [], []>} : vector<152x48xf32>, vector<48x32xf32>, vector<152x32xf32> -> vector<152x32xf32>
    %c2 = arith.constant 2 : index
    %c0_14 = arith.constant 0 : index
    %19 = vector.load %arg6[%c2, %c0_14] : memref<4x128xf32, #tpu.memory_space<vmem>>, vector<1x32xf32>
    %20 = vector.broadcast %19 : vector<1x32xf32> to vector<152x32xf32>
    %21 = arith.addf %18, %20 : vector<152x32xf32>
    %cst_15 = arith.constant 4.000000e-01 : f32
    %22 = vector.broadcast %cst_15 : f32 to vector<152x32xf32>
    %23 = arith.mulf %22, %21 : vector<152x32xf32>
    %24 = arith.maximumf %21, %23 : vector<152x32xf32>
    %c0_16 = arith.constant 0 : index
    %c0_17 = arith.constant 0 : index
    %25 = vector.load %arg5[%c0_16, %c0_17] : memref<32x16xf32, #tpu.memory_space<vmem>>, vector<32x16xf32>
    %cst_18 = arith.constant dense<0.000000e+00> : vector<152x16xf32>
    %26 = tpu.matmul %24, %25, %cst_18 {dimension_numbers = #tpu.dot_dimension_numbers<[1], [0], [0], [1], [0, 0, 1, 1], [], []>} : vector<152x32xf32>, vector<32x16xf32>, vector<152x16xf32> -> vector<152x16xf32>
    %c3 = arith.constant 3 : index
    %c0_19 = arith.constant 0 : index
    %27 = vector.load %arg6[%c3, %c0_19] : memref<4x128xf32, #tpu.memory_space<vmem>>, vector<1x16xf32>
    %28 = vector.broadcast %27 : vector<1x16xf32> to vector<152x16xf32>
    %29 = arith.addf %26, %28 : vector<152x16xf32>
    %cst_20 = arith.constant 5.000000e-01 : f32
    %30 = vector.broadcast %cst_20 : f32 to vector<152x16xf32>
    %31 = arith.mulf %30, %29 : vector<152x16xf32>
    %32 = math.tanh %31 : vector<152x16xf32>
    %cst_21 = arith.constant 1.000000e+00 : f32
    %33 = vector.broadcast %cst_21 : f32 to vector<152x16xf32>
    %34 = arith.addf %32, %33 : vector<152x16xf32>
    %cst_22 = arith.constant 5.000000e-01 : f32
    %35 = vector.broadcast %cst_22 : f32 to vector<152x16xf32>
    %36 = arith.mulf %35, %34 : vector<152x16xf32>
    %c0_23 = arith.constant 0 : index
    %c0_24 = arith.constant 0 : index
    %37 = vector.load %arg7[%c0_23, %c0_24] : memref<152x16xf32, #tpu.memory_space<vmem>>, vector<152x16xf32>
    tpu.vector_store %arg7[%c0_23, %c0_24], %36 {strides = array<i32>} : memref<152x16xf32, #tpu.memory_space<vmem>>, vector<152x16xf32>,
    return
  }
  func.func @transform_0(%arg0: i32) -> (i32, i32) {
    %c0_i32 = arith.constant 0 : i32
    %c0_i32_0 = arith.constant 0 : i32
    return %arg0, %c0_i32 : i32, i32
  }
  func.func @transform_1(%arg0: i32) -> (i32, i32) {
    %c0_i32 = arith.constant 0 : i32
    %c0_i32_0 = arith.constant 0 : i32
    %c0_i32_1 = arith.constant 0 : i32
    return %c0_i32, %c0_i32_0 : i32, i32
  }
  func.func @transform_2(%arg0: i32) -> (i32, i32) {
    %c0_i32 = arith.constant 0 : i32
    %c0_i32_0 = arith.constant 0 : i32
    %c0_i32_1 = arith.constant 0 : i32
    return %c0_i32, %c0_i32_0 : i32, i32
  }
  func.func @transform_3(%arg0: i32) -> (i32, i32) {
    %c0_i32 = arith.constant 0 : i32
    %c0_i32_0 = arith.constant 0 : i32
    %c0_i32_1 = arith.constant 0 : i32
    return %c0_i32, %c0_i32_0 : i32, i32
  }
  func.func @transform_4(%arg0: i32) -> (i32, i32) {
    %c0_i32 = arith.constant 0 : i32
    %c0_i32_0 = arith.constant 0 : i32
    %c0_i32_1 = arith.constant 0 : i32
    return %c0_i32, %c0_i32_0 : i32, i32
  }
  func.func @transform_5(%arg0: i32) -> (i32, i32) {
    %c0_i32 = arith.constant 0 : i32
    %c0_i32_0 = arith.constant 0 : i32
    %c0_i32_1 = arith.constant 0 : i32
    return %c0_i32, %c0_i32_0 : i32, i32
  }
  func.func @transform_6(%arg0: i32) -> (i32, i32) {
    %c0_i32 = arith.constant 0 : i32
    %c0_i32_0 = arith.constant 0 : i32
    return %arg0, %c0_i32 : i32, i32
  }
}

</mosaic_0001>

<llo_original>
// kernel: tpu_custom_call.1
$region0: #{tpu_custom_call.1}
  #allocation0 [shape = 'u32[]', space=smem, size = 0x4, offset = 0x4, fixed_abs, tag = 'smem constant byte address 0x4 - core index']
  #allocation1 [shape = 'u32[72,128]{1,0:T(1,128)}', space=vmem, size = 0x9000, scoped, tag = 'internal scratch']
  %s0 = inlined_call_operand.vmem [shape: f32[300,32], index: 0, kind: input, shape index: {}]
  %s1 = inlined_call_operand.vmem [shape: f32[32,64], index: 1, kind: input, shape index: {}]
  %s2 = inlined_call_operand.vmem [shape: f32[64,48], index: 2, kind: input, shape index: {}]
  %s3 = inlined_call_operand.vmem [shape: f32[48,32], index: 3, kind: input, shape index: {}]
  %s4 = inlined_call_operand.vmem [shape: f32[32,16], index: 4, kind: input, shape index: {}]
  %s5 = inlined_call_operand.vmem [shape: f32[4,128], index: 5, kind: input, shape index: {}]
  %s6 = inlined_call_operand.vmem [shape: f32[300,16], index: 6, kind: output, shape index: {}]
  %s7 = sld [smem:[#allocation0]]
  $region57: #{tpu_custom_call.1} parent=0
    _
  %s9 = ssub.s32 1, %s7
  %s10 = scalar_select 0, %s9, %s7
  loop: start=0, step=1, limit=4
  $region2: #{tpu_custom_call.1} parent=0 // loop_pre_header
    _
  $region3: #{tpu_custom_call.1} parent=0 // loop_header
    %s12 = sphi 0, %s16
    %p13 = scmp.ge.s32.totalorder %s12, 4
    %s22 = sphi 0, %s24
    %s25 = sphi 0, %s22
    %s26 = sphi 0, %s25
    %s42 = sphi 0, %s26
    %s46 = sphi 0, %s46
    %s48 = sphi 0, %s46
    %s49 = sphi 0, %s48
    %s63 = sphi 0, %s49
    %s67 = sphi 0, %s67
    %s69 = sphi 0, %s67
    %s70 = sphi 0, %s69
    %s84 = sphi 0, %s70
    %s88 = sphi 0, %s88
    %s90 = sphi 0, %s88
    %s91 = sphi 0, %s90
    %s105 = sphi 0, %s91
    %s109 = sphi 0, %s109
    %s111 = sphi 0, %s109
    %s112 = sphi 0, %s111
    %s126 = sphi 0, %s112
    %s130 = sphi 0, %s130
    %s132 = sphi 0, %s130
    %s133 = sphi 0, %s132
    %s147 = sphi 0, %s133
    %s153 = sphi 0, %s155
    %s156 = sphi 0, %s153
    %s157 = sphi 0, %s156
    %s173 = sphi 0, %s157
  $region4: #{tpu_custom_call.1} parent=0 // loop_header_branch
    %15 = sbr.rel (%p13) target = $region8
  $region5: #{tpu_custom_call.1} parent=0 // loop_body
    %s17 = ssub.s32 %s12, 1
    %s18 = ssub.s32 %s12, 2
    %s19 = sadd.s32 %s12, 1
    %s20 = ssub.s32 %s12, %s19
    %p21 = scmp.eq.s32.totalorder %s20, 0
    %s23 = sadd.s32 %s22, 1
    %s24 = scalar_select %p21, %s22, %s23
    %p27 = pneg %p21
    %p28 = scmp.eq.s32.totalorder %s12, 1
    %p29 = por %p27, %p28
    %p30 = scmp.ne.s32.totalorder %s22, %s25
    %p31 = scmp.eq.s32.totalorder %s12, 0
    %p32 = por %p30, %p31
    %p33 = scmp.ne.s32.totalorder %s22, %s25
    %p34 = scmp.eq.s32.totalorder %s17, 1
    %p35 = por %p33, %p34
    %p36 = scmp.ne.s32.totalorder %s25, %s26
    %p37 = scmp.eq.s32.totalorder %s17, 0
    %p38 = por %p36, %p37
    %p39 = scmp.ne.s32.totalorder %s25, %s26
    %p40 = scmp.eq.s32.totalorder %s18, 1
    %p41 = por %p39, %p40
    %p43 = scmp.ne.s32.totalorder %s26, %s42
    %p44 = scmp.eq.s32.totalorder %s18, 0
    %p45 = por %p43, %p44
    %s47 = sadd.s32 %s46, 1
    %p50 = scmp.eq.s32.totalorder %s12, 1
    %p51 = scmp.ne.s32.totalorder %s46, %s48
    %p52 = scmp.eq.s32.totalorder %s12, 0
    %p53 = por %p51, %p52
    %p54 = scmp.ne.s32.totalorder %s46, %s48
    %p55 = scmp.eq.s32.totalorder %s17, 1
    %p56 = por %p54, %p55
    %p57 = scmp.ne.s32.totalorder %s48, %s49
    %p58 = scmp.eq.s32.totalorder %s17, 0
    %p59 = por %p57, %p58
    %p60 = scmp.ne.s32.totalorder %s48, %s49
    %p61 = scmp.eq.s32.totalorder %s18, 1
    %p62 = por %p60, %p61
    %p64 = scmp.ne.s32.totalorder %s49, %s63
    %p65 = scmp.eq.s32.totalorder %s18, 0
    %p66 = por %p64, %p65
    %s68 = sadd.s32 %s67, 1
    %p71 = scmp.eq.s32.totalorder %s12, 1
    %p72 = scmp.ne.s32.totalorder %s67, %s69
    %p73 = scmp.eq.s32.totalorder %s12, 0
    %p74 = por %p72, %p73
    %p75 = scmp.ne.s32.totalorder %s67, %s69
    %p76 = scmp.eq.s32.totalorder %s17, 1
    %p77 = por %p75, %p76
    %p78 = scmp.ne.s32.totalorder %s69, %s70
    %p79 = scmp.eq.s32.totalorder %s17, 0
    %p80 = por %p78, %p79
    %p81 = scmp.ne.s32.totalorder %s69, %s70
    %p82 = scmp.eq.s32.totalorder %s18, 1
    %p83 = por %p81, %p82
    %p85 = scmp.ne.s32.totalorder %s70, %s84
    %p86 = scmp.eq.s32.totalorder %s18, 0
    %p87 = por %p85, %p86
    %s89 = sadd.s32 %s88, 1
    %p92 = scmp.eq.s32.totalorder %s12, 1
    %p93 = scmp.ne.s32.totalorder %s88, %s90
    %p94 = scmp.eq.s32.totalorder %s12, 0
    %p95 = por %p93, %p94
    %p96 = scmp.ne.s32.totalorder %s88, %s90
    %p97 = scmp.eq.s32.totalorder %s17, 1
    %p98 = por %p96, %p97
    %p99 = scmp.ne.s32.totalorder %s90, %s91
    %p100 = scmp.eq.s32.totalorder %s17, 0
    %p101 = por %p99, %p100
    %p102 = scmp.ne.s32.totalorder %s90, %s91
    %p103 = scmp.eq.s32.totalorder %s18, 1
    %p104 = por %p102, %p103
    %p106 = scmp.ne.s32.totalorder %s91, %s105
    %p107 = scmp.eq.s32.totalorder %s18, 0
    %p108 = por %p106, %p107
    %s110 = sadd.s32 %s109, 1
    %p113 = scmp.eq.s32.totalorder %s12, 1
    %p114 = scmp.ne.s32.totalorder %s109, %s111
    %p115 = scmp.eq.s32.totalorder %s12, 0
    %p116 = por %p114, %p115
    %p117 = scmp.ne.s32.totalorder %s109, %s111
    %p118 = scmp.eq.s32.totalorder %s17, 1
    %p119 = por %p117, %p118
    %p120 = scmp.ne.s32.totalorder %s111, %s112
    %p121 = scmp.eq.s32.totalorder %s17, 0
    %p122 = por %p120, %p121
    %p123 = scmp.ne.s32.totalorder %s111, %s112
    %p124 = scmp.eq.s32.totalorder %s18, 1
    %p125 = por %p123, %p124
    %p127 = scmp.ne.s32.totalorder %s112, %s126
    %p128 = scmp.eq.s32.totalorder %s18, 0
    %p129 = por %p127, %p128
    %s131 = sadd.s32 %s130, 1
    %p134 = scmp.eq.s32.totalorder %s12, 1
    %p135 = scmp.ne.s32.totalorder %s130, %s132
    %p136 = scmp.eq.s32.totalorder %s12, 0
    %p137 = por %p135, %p136
    %p138 = scmp.ne.s32.totalorder %s130, %s132
    %p139 = scmp.eq.s32.totalorder %s17, 1
    %p140 = por %p138, %p139
    %p141 = scmp.ne.s32.totalorder %s132, %s133
    %p142 = scmp.eq.s32.totalorder %s17, 0
    %p143 = por %p141, %p142
    %p144 = scmp.ne.s32.totalorder %s132, %s133
    %p145 = scmp.eq.s32.totalorder %s18, 1
    %p146 = por %p144, %p145
    %p148 = scmp.ne.s32.totalorder %s133, %s147
    %p149 = scmp.eq.s32.totalorder %s18, 0
    %p150 = por %p148, %p149
    %s151 = ssub.s32 %s12, %s19
    %p152 = scmp.eq.s32.totalorder %s151, 0
    %s154 = sadd.s32 %s153, 1
    %s155 = scalar_select %p152, %s153, %s154
    %p158 = pneg %p152
    %p159 = scmp.eq.s32.totalorder %s12, 1
    %p160 = por %p158, %p159
    %p161 = scmp.ne.s32.totalorder %s153, %s156
    %p162 = scmp.eq.s32.totalorder %s12, 0
    %p163 = por %p161, %p162
    %p164 = scmp.ne.s32.totalorder %s153, %s156
    %p165 = scmp.eq.s32.totalorder %s17, 1
    %p166 = por %p164, %p165
    %p167 = scmp.ne.s32.totalorder %s156, %s157
    %p168 = scmp.eq.s32.totalorder %s17, 0
    %p169 = por %p167, %p168
    %p170 = scmp.ne.s32.totalorder %s156, %s157
    %p171 = scmp.eq.s32.totalorder %s18, 1
    %p172 = por %p170, %p171
    %p174 = scmp.ne.s32.totalorder %s157, %s173
    %p175 = scmp.eq.s32.totalorder %s18, 0
    %p176 = por %p174, %p175
    %p177 = scmp.le.s32.totalorder 1, %s12
    %p178 = scmp.lt.s32.totalorder %s12, 3
    %p179 = pnand %p177, %p178
    %p180 = pneg %p179
    // Predicated region
    $region9: #{tpu_custom_call.1} parent=5 // pred_check
      _
    $region10: #{tpu_custom_call.1} parent=5 // pred_check_branch
      %182 = sbr.rel (%p179) target = $region12
    $region11: #{tpu_custom_call.1} parent=5 // pred_region
      %s183 = ssub.s32 %s12, 1
      // Predicated region
      $region13: #{tpu_custom_call.1} parent=11 // pred_check
        %p184 = pneg %p59
      $region14: #{tpu_custom_call.1} parent=11 // pred_check_branch
        %186 = sbr.rel (%p184) target = $region16
      $region15: #{tpu_custom_call.1} parent=11 // pred_region
        _
      $region16: #{tpu_custom_call.1} parent=11 // pred_fallthru
        _
      // Predicated region
      $region17: #{tpu_custom_call.1} parent=11 // pred_check
        %p187 = pneg %p80
      $region18: #{tpu_custom_call.1} parent=11 // pred_check_branch
        %189 = sbr.rel (%p187) target = $region20
      $region19: #{tpu_custom_call.1} parent=11 // pred_region
        _
      $region20: #{tpu_custom_call.1} parent=11 // pred_fallthru
        _
      // Predicated region
      $region21: #{tpu_custom_call.1} parent=11 // pred_check
        %p190 = pneg %p101
      $region22: #{tpu_custom_call.1} parent=11 // pred_check_branch
        %192 = sbr.rel (%p190) target = $region24
      $region23: #{tpu_custom_call.1} parent=11 // pred_region
        _
      $region24: #{tpu_custom_call.1} parent=11 // pred_fallthru
        _
      // Predicated region
      $region25: #{tpu_custom_call.1} parent=11 // pred_check
        %p193 = pneg %p122
      $region26: #{tpu_custom_call.1} parent=11 // pred_check_branch
        %195 = sbr.rel (%p193) target = $region28
      $region27: #{tpu_custom_call.1} parent=11 // pred_region
        _
      $region28: #{tpu_custom_call.1} parent=11 // pred_fallthru
        _
      // Predicated region
      $region29: #{tpu_custom_call.1} parent=11 // pred_check
        %p196 = pneg %p143
      $region30: #{tpu_custom_call.1} parent=11 // pred_check_branch
        %198 = sbr.rel (%p196) target = $region32
      $region31: #{tpu_custom_call.1} parent=11 // pred_region
        _
      $region32: #{tpu_custom_call.1} parent=11 // pred_fallthru
        _
    $region12: #{tpu_custom_call.1} parent=5 // pred_fallthru
      _
    %p199 = scmp.lt.s32.totalorder %s12, 2
    // Predicated region
    $region33: #{tpu_custom_call.1} parent=5 // pred_check
      %p200 = pneg %p199
    $region34: #{tpu_custom_call.1} parent=5 // pred_check_branch
      %202 = sbr.rel (%p200) target = $region36
    $region35: #{tpu_custom_call.1} parent=5 // pred_region
      // Predicated region
      $region37: #{tpu_custom_call.1} parent=35 // pred_check
        %p203 = pneg %p32
      $region38: #{tpu_custom_call.1} parent=35 // pred_check_branch
        %205 = sbr.rel (%p203) target = $region40
      $region39: #{tpu_custom_call.1} parent=35 // pred_region
        %s206 = smul.u32 19, %s12
        %p207 = scmp.lt.s32.totalorder %s206, 37
        %s208 = scalar_select %p207, %s206, 37
        %s209 = smul.addr %s208, 8
        %s210 = scalar_lea.vmem %s0, %s209
        %s211 = smul.u32 19, %s12
      $region40: #{tpu_custom_call.1} parent=35 // pred_fallthru
        _
    $region36: #{tpu_custom_call.1} parent=5 // pred_fallthru
      _
    %p212 = scmp.le.s32.totalorder 1, %s12
    %p213 = scmp.lt.s32.totalorder %s12, 3
    %p214 = pnand %p212, %p213
    %p215 = pneg %p214
    // Predicated region
    $region41: #{tpu_custom_call.1} parent=5 // pred_check
      _
    $region42: #{tpu_custom_call.1} parent=5 // pred_check_branch
      %217 = sbr.rel (%p214) target = $region44
    $region43: #{tpu_custom_call.1} parent=5 // pred_region
      %s218 = ssub.s32 %s12, 1
      %s219 = smul.u32 19, %s17
      %p220 = scmp.lt.s32.totalorder %s219, 37
      %s221 = scalar_select %p220, %s219, 37
      %s222 = smul.addr %s221, 8
      %s223 = scalar_lea.vmem %s0, %s222
      %p224 = pneg %p38
      %p225 = pneg %p35
      %p226 = pneg %p59
      %p227 = pneg %p56
      %p228 = pneg %p80
      %p229 = pneg %p77
      %p230 = pneg %p101
      %p231 = pneg %p98
      %p232 = pneg %p122
      %p233 = pneg %p119
      %p234 = pneg %p143
      %p235 = pneg %p140
      %p236 = pneg %p169
      %p237 = pneg %p166
      %s238 = smul.u32 19, %s17
      %p239 = scmp.lt.s32.totalorder %s238, 37
      %s240 = scalar_select %p239, %s238, 37
      %s241 = smul.addr %s240, 8
      %s242 = scalar_lea.vmem %s6, %s241
      %s243 = smul.u32 19, %s17
      %p244 = scmp.lt.s32.totalorder %s243, 37
      %s245 = scalar_select %p244, %s243, 37
      %s246 = smul.addr %s245, 8
      %s247 = scalar_lea.vmem %s0, %s246
      %s248 = smul.u32 19, %s17
      %s249 = smul.u32 19, %s17
      %p250 = scmp.lt.s32.totalorder %s249, 37
      %s251 = scalar_select %p250, %s249, 37
      %s252 = smul.addr %s251, 8
      %s253 = scalar_lea.vmem %s6, %s252
      %s254 = smul.u32 19, %s17
      %v255 = vld [vmem:[%s247] sm:$0xff]
      %v256 = vld [vmem:[%s247 + $0x8] sm:$0xff]
      %v257 = vld [vmem:[%s247 + $0x10] sm:$0xff]
      %v258 = vld [vmem:[%s247 + $0x18] sm:$0xff]
      %v259 = vld [vmem:[%s247 + $0x20] sm:$0xff]
      %v260 = vld [vmem:[%s247 + $0x28] sm:$0xff]
      %v261 = vld [vmem:[%s247 + $0x30] sm:$0xff]
      %v262 = vld [vmem:[%s247 + $0x38] sm:$0xff]
      %v263 = vld [vmem:[%s247 + $0x40] sm:$0xff]
      %v264 = vld [vmem:[%s247 + $0x48] sm:$0xff]
      %v265 = vld [vmem:[%s247 + $0x50] sm:$0xff]
      %v266 = vld [vmem:[%s247 + $0x58] sm:$0xff]
      %v267 = vld [vmem:[%s247 + $0x60] sm:$0xff]
      %v268 = vld [vmem:[%s247 + $0x68] sm:$0xff]
      %v269 = vld [vmem:[%s247 + $0x70] sm:$0xff]
      %v270 = vld [vmem:[%s247 + $0x78] sm:$0xff]
      %v271 = vld [vmem:[%s247 + $0x80] sm:$0xff]
      %v272 = vld [vmem:[%s247 + $0x88] sm:$0xff]
      %v273 = vld [vmem:[%s247 + $0x90] sm:$0xff]
      %v274 = vld [vmem:[%s1] sm:$0xff]
      %v275 = vld [vmem:[%s1 + $0x8] sm:$0xff]
      %v276 = vld [vmem:[%s1 + $0x10] sm:$0xff]
      %v277 = vld [vmem:[%s1 + $0x18] sm:$0xff]
      %v278 = vld [vmem:[%s5] sm:$0x1]
      %v279 = vperm.slane %v278, 0
      %vm280 = vcmask 261120
      %v282 = vsel %vm280, %v255, 0
      %v285 = vsel %vm280, %v256, 0
      %v288 = vsel %vm280, %v257, 0
      %v291 = vsel %vm280, %v258, 0
      %v294 = vsel %vm280, %v259, 0
      %v297 = vsel %vm280, %v260, 0
      %v300 = vsel %vm280, %v261, 0
      %v303 = vsel %vm280, %v262, 0
      %v306 = vsel %vm280, %v263, 0
      %v309 = vsel %vm280, %v264, 0
      %v312 = vsel %vm280, %v265, 0
      %v315 = vsel %vm280, %v266, 0
      %v318 = vsel %vm280, %v267, 0
      %v321 = vsel %vm280, %v268, 0
      %v324 = vsel %vm280, %v269, 0
      %v327 = vsel %vm280, %v270, 0
      %v330 = vsel %vm280, %v271, 0
      %v333 = vsel %vm280, %v272, 0
      %v336 = vsel %vm280, %v273, 0
      %338 = vmatpush.msra.mxu0 0.0
      %339 = vmatpush.msra.mxu0 0.0
      %340 = vmatpush.msra.mxu0 0.0
      %341 = vmatpush.msra.mxu0 0.0
      %342 = vmatpush.msra.mxu0 0.0
      %343 = vmatpush.msra.mxu0 0.0
      %344 = vmatpush.msra.mxu0 0.0
      %345 = vmatpush.msra.mxu0 0.0
      %346 = vmatpush.msra.mxu0 0.0
      %347 = vmatpush.msra.mxu0 0.0
      %348 = vmatpush.msra.mxu0 0.0
      %349 = vmatpush.msra.mxu0 0.0
      %350 = vmatpush.msra.mxu0 %v277
      %351 = vmatpush.msra.mxu0 %v276
      %352 = vmatpush.msra.mxu0 %v275
      %353 = vmatpush.msra.mxu0 %v274
      %354 = vmatmul.f32.gmra.mxu0 %v282
      %v355 = vpop.f32.mrf.mxu0
      %v356 = vadd.f32 %v279, %v355
      %357 = vmatmul.f32.gmra.mxu0 %v285
      %v358 = vpop.f32.mrf.mxu0
      %v359 = vadd.f32 %v279, %v358
      %360 = vmatmul.f32.gmra.mxu0 %v288
      %v361 = vpop.f32.mrf.mxu0
      %v362 = vadd.f32 %v279, %v361
      %363 = vmatmul.f32.gmra.mxu0 %v291
      %v364 = vpop.f32.mrf.mxu0
      %v365 = vadd.f32 %v279, %v364
      %366 = vmatmul.f32.gmra.mxu0 %v294
      %v367 = vpop.f32.mrf.mxu0
      %v368 = vadd.f32 %v279, %v367
      %369 = vmatmul.f32.gmra.mxu0 %v297
      %v370 = vpop.f32.mrf.mxu0
      %v371 = vadd.f32 %v279, %v370
      %372 = vmatmul.f32.gmra.mxu0 %v300
      %v373 = vpop.f32.mrf.mxu0
      %v374 = vadd.f32 %v279, %v373
      %375 = vmatmul.f32.gmra.mxu0 %v303
      %v376 = vpop.f32.mrf.mxu0
      %v377 = vadd.f32 %v279, %v376
      %378 = vmatmul.f32.gmra.mxu0 %v306
      %v379 = vpop.f32.mrf.mxu0
      %v380 = vadd.f32 %v279, %v379
      %381 = vmatmul.f32.gmra.mxu0 %v309
      %v382 = vpop.f32.mrf.mxu0
      %v383 = vadd.f32 %v279, %v382
      %384 = vmatmul.f32.gmra.mxu0 %v312
      %v385 = vpop.f32.mrf.mxu0
      %v386 = vadd.f32 %v279, %v385
      %387 = vmatmul.f32.gmra.mxu0 %v315
      %v388 = vpop.f32.mrf.mxu0
      %v389 = vadd.f32 %v279, %v388
      %390 = vmatmul.f32.gmra.mxu0 %v318
      %v391 = vpop.f32.mrf.mxu0
      %v392 = vadd.f32 %v279, %v391
      %393 = vmatmul.f32.gmra.mxu0 %v321
      %v394 = vpop.f32.mrf.mxu0
      %v395 = vadd.f32 %v279, %v394
      %396 = vmatmul.f32.gmra.mxu0 %v324
      %v397 = vpop.f32.mrf.mxu0
      %v398 = vadd.f32 %v279, %v397
      %399 = vmatmul.f32.gmra.mxu0 %v327
      %v400 = vpop.f32.mrf.mxu0
      %v401 = vadd.f32 %v279, %v400
      %402 = vmatmul.f32.gmra.mxu0 %v330
      %v403 = vpop.f32.mrf.mxu0
      %v404 = vadd.f32 %v279, %v403
      %405 = vmatmul.f32.gmra.mxu0 %v333
      %v406 = vpop.f32.mrf.mxu0
      %v407 = vadd.f32 %v279, %v406
      %408 = vmatmul.f32.gmra.mxu0 %v336
      %v409 = vpop.f32.mrf.mxu0
      %v410 = vadd.f32 %v279, %v409
      %411 = vdwg.mxu0
      %v412 = vmul.f32 %v356, 0.4
      %v413 = vmul.f32 %v359, 0.4
      %v414 = vmul.f32 %v362, 0.4
      %v415 = vmul.f32 %v365, 0.4
      %v416 = vmul.f32 %v368, 0.4
      %v417 = vmul.f32 %v371, 0.4
      %v418 = vmul.f32 %v374, 0.4
      %v419 = vmul.f32 %v377, 0.4
      %v420 = vmul.f32 %v380, 0.4
      %v421 = vmul.f32 %v383, 0.4
      %v422 = vmul.f32 %v386, 0.4
      %v423 = vmul.f32 %v389, 0.4
      %v424 = vmul.f32 %v392, 0.4
      %v425 = vmul.f32 %v395, 0.4
      %v426 = vmul.f32 %v398, 0.4
      %v427 = vmul.f32 %v401, 0.4
      %v428 = vmul.f32 %v404, 0.4
      %v429 = vmul.f32 %v407, 0.4
      %v430 = vmul.f32 %v410, 0.4
      %v431 = vmax.f32 %v356, %v412
      %v432 = vmax.f32 %v359, %v413
      %v433 = vmax.f32 %v362, %v414
      %v434 = vmax.f32 %v365, %v415
      %v435 = vmax.f32 %v368, %v416
      %v436 = vmax.f32 %v371, %v417
      %v437 = vmax.f32 %v374, %v418
      %v438 = vmax.f32 %v377, %v419
      %v439 = vmax.f32 %v380, %v420
      %v440 = vmax.f32 %v383, %v421
      %v441 = vmax.f32 %v386, %v422
      %v442 = vmax.f32 %v389, %v423
      %v443 = vmax.f32 %v392, %v424
      %v444 = vmax.f32 %v395, %v425
      %v445 = vmax.f32 %v398, %v426
      %v446 = vmax.f32 %v401, %v427
      %v447 = vmax.f32 %v404, %v428
      %v448 = vmax.f32 %v407, %v429
      %v449 = vmax.f32 %v410, %v430
      %v450 = vld [vmem:[%s2] sm:$0xff]
      %v451 = vld [vmem:[%s2 + $0x8] sm:$0xff]
      %v452 = vld [vmem:[%s2 + $0x10] sm:$0xff]
      %v453 = vld [vmem:[%s2 + $0x18] sm:$0xff]
      %v454 = vld [vmem:[%s2 + $0x20] sm:$0xff]
      %v455 = vld [vmem:[%s2 + $0x28] sm:$0xff]
      %v456 = vld [vmem:[%s2 + $0x30] sm:$0xff]
      %v457 = vld [vmem:[%s2 + $0x38] sm:$0xff]
      %v458 = vld [vmem:[%s5 + $0x1] sm:$0x1]
      %v459 = vperm.slane %v458, 0
      %vm460 = vcmask 523264
      %v462 = vsel %vm460, %v431, 0
      %v465 = vsel %vm460, %v432, 0
      %v468 = vsel %vm460, %v433, 0
      %v471 = vsel %vm460, %v434, 0
      %v474 = vsel %vm460, %v435, 0
      %v477 = vsel %vm460, %v436, 0
      %v480 = vsel %vm460, %v437, 0
      %v483 = vsel %vm460, %v438, 0
      %v486 = vsel %vm460, %v439, 0
      %v489 = vsel %vm460, %v440, 0
      %v492 = vsel %vm460, %v441, 0
      %v495 = vsel %vm460, %v442, 0
      %v498 = vsel %vm460, %v443, 0
      %v501 = vsel %vm460, %v444, 0
      %v504 = vsel %vm460, %v445, 0
      %v507 = vsel %vm460, %v446, 0
      %v510 = vsel %vm460, %v447, 0
      %v513 = vsel %vm460, %v448, 0
      %v516 = vsel %vm460, %v449, 0
      %518 = vmatpush.msra.mxu0 0.0
      %519 = vmatpush.msra.mxu0 0.0
      %520 = vmatpush.msra.mxu0 0.0
      %521 = vmatpush.msra.mxu0 0.0
      %522 = vmatpush.msra.mxu0 0.0
      %523 = vmatpush.msra.mxu0 0.0
      %524 = vmatpush.msra.mxu0 0.0
      %525 = vmatpush.msra.mxu0 0.0
      %526 = vmatpush.msra.mxu0 %v457
      %527 = vmatpush.msra.mxu0 %v456
      %528 = vmatpush.msra.mxu0 %v455
      %529 = vmatpush.msra.mxu0 %v454
      %530 = vmatpush.msra.mxu0 %v453
      %531 = vmatpush.msra.mxu0 %v452
      %532 = vmatpush.msra.mxu0 %v451
      %533 = vmatpush.msra.mxu0 %v450
      %534 = vmatmul.f32.gmra.mxu0 %v462
      %v535 = vpop.f32.mrf.mxu0
      %v536 = vadd.f32 %v459, %v535
      %537 = vmatmul.f32.gmra.mxu0 %v465
      %v538 = vpop.f32.mrf.mxu0
      %v539 = vadd.f32 %v459, %v538
      %540 = vmatmul.f32.gmra.mxu0 %v468
      %v541 = vpop.f32.mrf.mxu0
      %v542 = vadd.f32 %v459, %v541
      %543 = vmatmul.f32.gmra.mxu0 %v471
      %v544 = vpop.f32.mrf.mxu0
      %v545 = vadd.f32 %v459, %v544
      %546 = vmatmul.f32.gmra.mxu0 %v474
      %v547 = vpop.f32.mrf.mxu0
      %v548 = vadd.f32 %v459, %v547
      %549 = vmatmul.f32.gmra.mxu0 %v477
      %v550 = vpop.f32.mrf.mxu0
      %v551 = vadd.f32 %v459, %v550
      %552 = vmatmul.f32.gmra.mxu0 %v480
      %v553 = vpop.f32.mrf.mxu0
      %v554 = vadd.f32 %v459, %v553
      %555 = vmatmul.f32.gmra.mxu0 %v483
      %v556 = vpop.f32.mrf.mxu0
      %v557 = vadd.f32 %v459, %v556
      %558 = vmatmul.f32.gmra.mxu0 %v486
      %v559 = vpop.f32.mrf.mxu0
      %v560 = vadd.f32 %v459, %v559
      %561 = vmatmul.f32.gmra.mxu0 %v489
      %v562 = vpop.f32.mrf.mxu0
      %v563 = vadd.f32 %v459, %v562
      %564 = vmatmul.f32.gmra.mxu0 %v492
      %v565 = vpop.f32.mrf.mxu0
      %v566 = vadd.f32 %v459, %v565
      %567 = vmatmul.f32.gmra.mxu0 %v495
      %v568 = vpop.f32.mrf.mxu0
      %v569 = vadd.f32 %v459, %v568
      %570 = vmatmul.f32.gmra.mxu0 %v498
      %v571 = vpop.f32.mrf.mxu0
      %v572 = vadd.f32 %v459, %v571
      %573 = vmatmul.f32.gmra.mxu0 %v501
      %v574 = vpop.f32.mrf.mxu0
      %v575 = vadd.f32 %v459, %v574
      %576 = vmatmul.f32.gmra.mxu0 %v504
      %v577 = vpop.f32.mrf.mxu0
      %v578 = vadd.f32 %v459, %v577
      %579 = vmatmul.f32.gmra.mxu0 %v507
      %v580 = vpop.f32.mrf.mxu0
      %v581 = vadd.f32 %v459, %v580
      %582 = vmatmul.f32.gmra.mxu0 %v510
      %v583 = vpop.f32.mrf.mxu0
      %v584 = vadd.f32 %v459, %v583
      %585 = vmatmul.f32.gmra.mxu0 %v513
      %v586 = vpop.f32.mrf.mxu0
      %v587 = vadd.f32 %v459, %v586
      %588 = vmatmul.f32.gmra.mxu0 %v516
      %v589 = vpop.f32.mrf.mxu0
      %v590 = vadd.f32 %v459, %v589
      %591 = vdwg.mxu0
      %v592 = vmul.f32 %v536, 0.4
      %v593 = vmul.f32 %v539, 0.4
      %v594 = vmul.f32 %v542, 0.4
      %v595 = vmul.f32 %v545, 0.4
      %v596 = vmul.f32 %v548, 0.4
      %v597 = vmul.f32 %v551, 0.4
      %v598 = vmul.f32 %v554, 0.4
      %v599 = vmul.f32 %v557, 0.4
      %v600 = vmul.f32 %v560, 0.4
      %v601 = vmul.f32 %v563, 0.4
      %v602 = vmul.f32 %v566, 0.4
      %v603 = vmul.f32 %v569, 0.4
      %v604 = vmul.f32 %v572, 0.4
      %v605 = vmul.f32 %v575, 0.4
      %v606 = vmul.f32 %v578, 0.4
      %v607 = vmul.f32 %v581, 0.4
      %v608 = vmul.f32 %v584, 0.4
      %v609 = vmul.f32 %v587, 0.4
      %v610 = vmul.f32 %v590, 0.4
      %v611 = vmax.f32 %v536, %v592
      %v612 = vmax.f32 %v539, %v593
      %v613 = vmax.f32 %v542, %v594
      %v614 = vmax.f32 %v545, %v595
      %v615 = vmax.f32 %v548, %v596
      %v616 = vmax.f32 %v551, %v597
      %v617 = vmax.f32 %v554, %v598
      %v618 = vmax.f32 %v557, %v599
      %v619 = vmax.f32 %v560, %v600
      %v620 = vmax.f32 %v563, %v601
      %v621 = vmax.f32 %v566, %v602
      %v622 = vmax.f32 %v569, %v603
      %v623 = vmax.f32 %v572, %v604
      %v624 = vmax.f32 %v575, %v605
      %v625 = vmax.f32 %v578, %v606
      %v626 = vmax.f32 %v581, %v607
      %v627 = vmax.f32 %v584, %v608
      %v628 = vmax.f32 %v587, %v609
      %v629 = vmax.f32 %v590, %v610
      %v630 = vld [vmem:[%s3] sm:$0xff]
      %v631 = vld [vmem:[%s3 + $0x8] sm:$0xff]
      %v632 = vld [vmem:[%s3 + $0x10] sm:$0xff]
      %v633 = vld [vmem:[%s3 + $0x18] sm:$0xff]
      %v634 = vld [vmem:[%s3 + $0x20] sm:$0xff]
      %v635 = vld [vmem:[%s3 + $0x28] sm:$0xff]
      %v636 = vld [vmem:[%s5 + $0x2] sm:$0x1]
      %v637 = vperm.slane %v636, 0
      %vm638 = vcmask 392192
      %v640 = vsel %vm638, %v611, 0
      %v643 = vsel %vm638, %v612, 0
      %v646 = vsel %vm638, %v613, 0
      %v649 = vsel %vm638, %v614, 0
      %v652 = vsel %vm638, %v615, 0
      %v655 = vsel %vm638, %v616, 0
      %v658 = vsel %vm638, %v617, 0
      %v661 = vsel %vm638, %v618, 0
      %v664 = vsel %vm638, %v619, 0
      %v667 = vsel %vm638, %v620, 0
      %v670 = vsel %vm638, %v621, 0
      %v673 = vsel %vm638, %v622, 0
      %v676 = vsel %vm638, %v623, 0
      %v679 = vsel %vm638, %v624, 0
      %v682 = vsel %vm638, %v625, 0
      %v685 = vsel %vm638, %v626, 0
      %v688 = vsel %vm638, %v627, 0
      %v691 = vsel %vm638, %v628, 0
      %v694 = vsel %vm638, %v629, 0
      %696 = vmatpush.msra.mxu0 0.0
      %697 = vmatpush.msra.mxu0 0.0
      %698 = vmatpush.msra.mxu0 0.0
      %699 = vmatpush.msra.mxu0 0.0
      %700 = vmatpush.msra.mxu0 0.0
      %701 = vmatpush.msra.mxu0 0.0
      %702 = vmatpush.msra.mxu0 0.0
      %703 = vmatpush.msra.mxu0 0.0
      %704 = vmatpush.msra.mxu0 0.0
      %705 = vmatpush.msra.mxu0 0.0
      %706 = vmatpush.msra.mxu0 %v635
      %707 = vmatpush.msra.mxu0 %v634
      %708 = vmatpush.msra.mxu0 %v633
      %709 = vmatpush.msra.mxu0 %v632
      %710 = vmatpush.msra.mxu0 %v631
      %711 = vmatpush.msra.mxu0 %v630
      %712 = vmatmul.f32.gmra.mxu0 %v640
      %v713 = vpop.f32.mrf.mxu0
      %v714 = vadd.f32 %v637, %v713
      %715 = vmatmul.f32.gmra.mxu0 %v643
      %v716 = vpop.f32.mrf.mxu0
      %v717 = vadd.f32 %v637, %v716
      %718 = vmatmul.f32.gmra.mxu0 %v646
      %v719 = vpop.f32.mrf.mxu0
      %v720 = vadd.f32 %v637, %v719
      %721 = vmatmul.f32.gmra.mxu0 %v649
      %v722 = vpop.f32.mrf.mxu0
      %v723 = vadd.f32 %v637, %v722
      %724 = vmatmul.f32.gmra.mxu0 %v652
      %v725 = vpop.f32.mrf.mxu0
      %v726 = vadd.f32 %v637, %v725
      %727 = vmatmul.f32.gmra.mxu0 %v655
      %v728 = vpop.f32.mrf.mxu0
      %v729 = vadd.f32 %v637, %v728
      %730 = vmatmul.f32.gmra.mxu0 %v658
      %v731 = vpop.f32.mrf.mxu0
      %v732 = vadd.f32 %v637, %v731
      %733 = vmatmul.f32.gmra.mxu0 %v661
      %v734 = vpop.f32.mrf.mxu0
      %v735 = vadd.f32 %v637, %v734
      %736 = vmatmul.f32.gmra.mxu0 %v664
      %v737 = vpop.f32.mrf.mxu0
      %v738 = vadd.f32 %v637, %v737
      %739 = vmatmul.f32.gmra.mxu0 %v667
      %v740 = vpop.f32.mrf.mxu0
      %v741 = vadd.f32 %v637, %v740
      %742 = vmatmul.f32.gmra.mxu0 %v670
      %v743 = vpop.f32.mrf.mxu0
      %v744 = vadd.f32 %v637, %v743
      %745 = vmatmul.f32.gmra.mxu0 %v673
      %v746 = vpop.f32.mrf.mxu0
      %v747 = vadd.f32 %v637, %v746
      %748 = vmatmul.f32.gmra.mxu0 %v676
      %v749 = vpop.f32.mrf.mxu0
      %v750 = vadd.f32 %v637, %v749
      %751 = vmatmul.f32.gmra.mxu0 %v679
      %v752 = vpop.f32.mrf.mxu0
      %v753 = vadd.f32 %v637, %v752
      %754 = vmatmul.f32.gmra.mxu0 %v682
      %v755 = vpop.f32.mrf.mxu0
      %v756 = vadd.f32 %v637, %v755
      %757 = vmatmul.f32.gmra.mxu0 %v685
      %v758 = vpop.f32.mrf.mxu0
      %v759 = vadd.f32 %v637, %v758
      %760 = vmatmul.f32.gmra.mxu0 %v688
      %v761 = vpop.f32.mrf.mxu0
      %v762 = vadd.f32 %v637, %v761
      %763 = vmatmul.f32.gmra.mxu0 %v691
      %v764 = vpop.f32.mrf.mxu0
      %v765 = vadd.f32 %v637, %v764
      %766 = vmatmul.f32.gmra.mxu0 %v694
      %v767 = vpop.f32.mrf.mxu0
      %v768 = vadd.f32 %v637, %v767
      %769 = vdwg.mxu0
      %v770 = vmul.f32 %v714, 0.4
      %v771 = vmul.f32 %v717, 0.4
      %v772 = vmul.f32 %v720, 0.4
      %v773 = vmul.f32 %v723, 0.4
      %v774 = vmul.f32 %v726, 0.4
      %v775 = vmul.f32 %v729, 0.4
      %v776 = vmul.f32 %v732, 0.4
      %v777 = vmul.f32 %v735, 0.4
      %v778 = vmul.f32 %v738, 0.4
      %v779 = vmul.f32 %v741, 0.4
      %v780 = vmul.f32 %v744, 0.4
      %v781 = vmul.f32 %v747, 0.4
      %v782 = vmul.f32 %v750, 0.4
      %v783 = vmul.f32 %v753, 0.4
      %v784 = vmul.f32 %v756, 0.4
      %v785 = vmul.f32 %v759, 0.4
      %v786 = vmul.f32 %v762, 0.4
      %v787 = vmul.f32 %v765, 0.4
      %v788 = vmul.f32 %v768, 0.4
      %v789 = vmax.f32 %v714, %v770
      %v790 = vmax.f32 %v717, %v771
      %v791 = vmax.f32 %v720, %v772
      %v792 = vmax.f32 %v723, %v773
      %v793 = vmax.f32 %v726, %v774
      %v794 = vmax.f32 %v729, %v775
      %v795 = vmax.f32 %v732, %v776
      %v796 = vmax.f32 %v735, %v777
      %v797 = vmax.f32 %v738, %v778
      %v798 = vmax.f32 %v741, %v779
      %v799 = vmax.f32 %v744, %v780
      %v800 = vmax.f32 %v747, %v781
      %v801 = vmax.f32 %v750, %v782
      %v802 = vmax.f32 %v753, %v783
      %v803 = vmax.f32 %v756, %v784
      %v804 = vmax.f32 %v759, %v785
      %v805 = vmax.f32 %v762, %v786
      %v806 = vmax.f32 %v765, %v787
      %v807 = vmax.f32 %v768, %v788
      %v808 = vld [vmem:[%s4] sm:$0xff]
      %v809 = vld [vmem:[%s4 + $0x8] sm:$0xff]
      %v810 = vld [vmem:[%s4 + $0x10] sm:$0xff]
      %v811 = vld [vmem:[%s4 + $0x18] sm:$0xff]
      %v812 = vld [vmem:[%s5 + $0x3] sm:$0x1]
      %v813 = vperm.slane %v812, 0
      %v815 = vsel %vm280, %v789, 0
      %v818 = vsel %vm280, %v790, 0
      %v821 = vsel %vm280, %v791, 0
      %v824 = vsel %vm280, %v792, 0
      %v827 = vsel %vm280, %v793, 0
      %v830 = vsel %vm280, %v794, 0
      %v833 = vsel %vm280, %v795, 0
      %v836 = vsel %vm280, %v796, 0
      %v839 = vsel %vm280, %v797, 0
      %v842 = vsel %vm280, %v798, 0
      %v845 = vsel %vm280, %v799, 0
      %v848 = vsel %vm280, %v800, 0
      %v851 = vsel %vm280, %v801, 0
      %v854 = vsel %vm280, %v802, 0
      %v857 = vsel %vm280, %v803, 0
      %v860 = vsel %vm280, %v804, 0
      %v863 = vsel %vm280, %v805, 0
      %v866 = vsel %vm280, %v806, 0
      %v869 = vsel %vm280, %v807, 0
      %871 = vmatpush.msra.mxu0 0.0
      %872 = vmatpush.msra.mxu0 0.0
      %873 = vmatpush.msra.mxu0 0.0
      %874 = vmatpush.msra.mxu0 0.0
      %875 = vmatpush.msra.mxu0 0.0
      %876 = vmatpush.msra.mxu0 0.0
      %877 = vmatpush.msra.mxu0 0.0
      %878 = vmatpush.msra.mxu0 0.0
      %879 = vmatpush.msra.mxu0 0.0
      %880 = vmatpush.msra.mxu0 0.0
      %881 = vmatpush.msra.mxu0 0.0
      %882 = vmatpush.msra.mxu0 0.0
      %883 = vmatpush.msra.mxu0 %v811
      %884 = vmatpush.msra.mxu0 %v810
      %885 = vmatpush.msra.mxu0 %v809
      %886 = vmatpush.msra.mxu0 %v808
      %887 = vmatmul.f32.gmra.mxu0 %v815
      %v888 = vpop.f32.mrf.mxu0
      %v889 = vadd.f32 %v813, %v888
      %890 = vmatmul.f32.gmra.mxu0 %v818
      %v891 = vpop.f32.mrf.mxu0
      %v892 = vadd.f32 %v813, %v891
      %893 = vmatmul.f32.gmra.mxu0 %v821
      %v894 = vpop.f32.mrf.mxu0
      %v895 = vadd.f32 %v813, %v894
      %896 = vmatmul.f32.gmra.mxu0 %v824
      %v897 = vpop.f32.mrf.mxu0
      %v898 = vadd.f32 %v813, %v897
      %899 = vmatmul.f32.gmra.mxu0 %v827
      %v900 = vpop.f32.mrf.mxu0
      %v901 = vadd.f32 %v813, %v900
      %902 = vmatmul.f32.gmra.mxu0 %v830
      %v903 = vpop.f32.mrf.mxu0
      %v904 = vadd.f32 %v813, %v903
      %905 = vmatmul.f32.gmra.mxu0 %v833
      %v906 = vpop.f32.mrf.mxu0
      %v907 = vadd.f32 %v813, %v906
      %908 = vmatmul.f32.gmra.mxu0 %v836
      %v909 = vpop.f32.mrf.mxu0
      %v910 = vadd.f32 %v813, %v909
      %911 = vmatmul.f32.gmra.mxu0 %v839
      %v912 = vpop.f32.mrf.mxu0
      %v913 = vadd.f32 %v813, %v912
      %914 = vmatmul.f32.gmra.mxu0 %v842
      %v915 = vpop.f32.mrf.mxu0
      %v916 = vadd.f32 %v813, %v915
      %917 = vmatmul.f32.gmra.mxu0 %v845
      %v918 = vpop.f32.mrf.mxu0
      %v919 = vadd.f32 %v813, %v918
      %920 = vmatmul.f32.gmra.mxu0 %v848
      %v921 = vpop.f32.mrf.mxu0
      %v922 = vadd.f32 %v813, %v921
      %923 = vmatmul.f32.gmra.mxu0 %v851
      %v924 = vpop.f32.mrf.mxu0
      %v925 = vadd.f32 %v813, %v924
      %926 = vmatmul.f32.gmra.mxu0 %v854
      %v927 = vpop.f32.mrf.mxu0
      %v928 = vadd.f32 %v813, %v927
      %929 = vmatmul.f32.gmra.mxu0 %v857
      %v930 = vpop.f32.mrf.mxu0
      %v931 = vadd.f32 %v813, %v930
      %932 = vmatmul.f32.gmra.mxu0 %v860
      %v933 = vpop.f32.mrf.mxu0
      %v934 = vadd.f32 %v813, %v933
      %935 = vmatmul.f32.gmra.mxu0 %v863
      %v936 = vpop.f32.mrf.mxu0
      %v937 = vadd.f32 %v813, %v936
      %938 = vmatmul.f32.gmra.mxu0 %v866
      %v939 = vpop.f32.mrf.mxu0
      %v940 = vadd.f32 %v813, %v939
      %941 = vmatmul.f32.gmra.mxu0 %v869
      %v942 = vpop.f32.mrf.mxu0
      %v943 = vadd.f32 %v813, %v942
      %944 = vdwg.mxu0
      %v945 = vmul.f32 %v889, 0.5
      %v946 = vmul.f32 %v892, 0.5
      %v947 = vmul.f32 %v895, 0.5
      %v948 = vmul.f32 %v898, 0.5
      %v949 = vmul.f32 %v901, 0.5
      %v950 = vmul.f32 %v904, 0.5
      %v951 = vmul.f32 %v907, 0.5
      %v952 = vmul.f32 %v910, 0.5
      %v953 = vmul.f32 %v913, 0.5
      %v954 = vmul.f32 %v916, 0.5
      %v955 = vmul.f32 %v919, 0.5
      %v956 = vmul.f32 %v922, 0.5
      %v957 = vmul.f32 %v925, 0.5
      %v958 = vmul.f32 %v928, 0.5
      %v959 = vmul.f32 %v931, 0.5
      %v960 = vmul.f32 %v934, 0.5
      %v961 = vmul.f32 %v937, 0.5
      %v962 = vmul.f32 %v940, 0.5
      %v963 = vmul.f32 %v943, 0.5
      %v964 = vtanh.pop %v945
      %v965 = vtanh.pop %v946
      %v966 = vtanh.pop %v947
      %v967 = vtanh.pop %v948
      %v968 = vtanh.pop %v949
      %v969 = vtanh.pop %v950
      %v970 = vtanh.pop %v951
      %v971 = vtanh.pop %v952
      %v972 = vtanh.pop %v953
      %v973 = vtanh.pop %v954
      %v974 = vtanh.pop %v955
      %v975 = vtanh.pop %v956
      %v976 = vtanh.pop %v957
      %v977 = vtanh.pop %v958
      %v978 = vtanh.pop %v959
      %v979 = vtanh.pop %v960
      %v980 = vtanh.pop %v961
      %v981 = vtanh.pop %v962
      %v982 = vtanh.pop %v963
      %v983 = vadd.f32 %v964, 1.0
      %v984 = vadd.f32 %v965, 1.0
      %v985 = vadd.f32 %v966, 1.0
      %v986 = vadd.f32 %v967, 1.0
      %v987 = vadd.f32 %v968, 1.0
      %v988 = vadd.f32 %v969, 1.0
      %v989 = vadd.f32 %v970, 1.0
      %v990 = vadd.f32 %v971, 1.0
      %v991 = vadd.f32 %v972, 1.0
      %v992 = vadd.f32 %v973, 1.0
      %v993 = vadd.f32 %v974, 1.0
      %v994 = vadd.f32 %v975, 1.0
      %v995 = vadd.f32 %v976, 1.0
      %v996 = vadd.f32 %v977, 1.0
      %v997 = vadd.f32 %v978, 1.0
      %v998 = vadd.f32 %v979, 1.0
      %v999 = vadd.f32 %v980, 1.0
      %v1000 = vadd.f32 %v981, 1.0
      %v1001 = vadd.f32 %v982, 1.0
      %v1002 = vmul.f32 %v983, 0.5
      %v1003 = vmul.f32 %v984, 0.5
      %v1004 = vmul.f32 %v985, 0.5
      %v1005 = vmul.f32 %v986, 0.5
      %v1006 = vmul.f32 %v987, 0.5
      %v1007 = vmul.f32 %v988, 0.5
      %v1008 = vmul.f32 %v989, 0.5
      %v1009 = vmul.f32 %v990, 0.5
      %v1010 = vmul.f32 %v991, 0.5
      %v1011 = vmul.f32 %v992, 0.5
      %v1012 = vmul.f32 %v993, 0.5
      %v1013 = vmul.f32 %v994, 0.5
      %v1014 = vmul.f32 %v995, 0.5
      %v1015 = vmul.f32 %v996, 0.5
      %v1016 = vmul.f32 %v997, 0.5
      %v1017 = vmul.f32 %v998, 0.5
      %v1018 = vmul.f32 %v999, 0.5
      %v1019 = vmul.f32 %v1000, 0.5
      %v1020 = vmul.f32 %v1001, 0.5
      %vm1021 = vcmask 130048
      %1022 = vst.msk [vmem:[%s253] sm:$0xff] %vm1021, %v1002
      %1023 = vst.msk [vmem:[%s253 + $0x8] sm:$0xff] %vm1021, %v1003
      %1024 = vst.msk [vmem:[%s253 + $0x10] sm:$0xff] %vm1021, %v1004
      %1025 = vst.msk [vmem:[%s253 + $0x18] sm:$0xff] %vm1021, %v1005
      %1026 = vst.msk [vmem:[%s253 + $0x20] sm:$0xff] %vm1021, %v1006
      %1027 = vst.msk [vmem:[%s253 + $0x28] sm:$0xff] %vm1021, %v1007
      %1028 = vst.msk [vmem:[%s253 + $0x30] sm:$0xff] %vm1021, %v1008
      %1029 = vst.msk [vmem:[%s253 + $0x38] sm:$0xff] %vm1021, %v1009
      %1030 = vst.msk [vmem:[%s253 + $0x40] sm:$0xff] %vm1021, %v1010
      %1031 = vst.msk [vmem:[%s253 + $0x48] sm:$0xff] %vm1021, %v1011
      %1032 = vst.msk [vmem:[%s253 + $0x50] sm:$0xff] %vm1021, %v1012
      %1033 = vst.msk [vmem:[%s253 + $0x58] sm:$0xff] %vm1021, %v1013
      %1034 = vst.msk [vmem:[%s253 + $0x60] sm:$0xff] %vm1021, %v1014
      %1035 = vst.msk [vmem:[%s253 + $0x68] sm:$0xff] %vm1021, %v1015
      %1036 = vst.msk [vmem:[%s253 + $0x70] sm:$0xff] %vm1021, %v1016
      %1037 = vst.msk [vmem:[%s253 + $0x78] sm:$0xff] %vm1021, %v1017
      %1038 = vst.msk [vmem:[%s253 + $0x80] sm:$0xff] %vm1021, %v1018
      %1039 = vst.msk [vmem:[%s253 + $0x88] sm:$0xff] %vm1021, %v1019
      %1040 = vst.msk [vmem:[%s253 + $0x90] sm:$0xff] %vm1021, %v1020
      %s1041 = smul.u32 19, %s17
      %p1042 = scmp.lt.s32.totalorder %s1041, 37
      %s1043 = scalar_select %p1042, %s1041, 37
      %s1044 = smul.addr %s1043, 8
      %s1045 = scalar_lea.vmem %s6, %s1044
      // Predicated region
      $region45: #{tpu_custom_call.1} parent=43 // pred_check
        %p1046 = pneg %p166
      $region46: #{tpu_custom_call.1} parent=43 // pred_check_branch
        %1048 = sbr.rel (%p1046) target = $region48
      $region47: #{tpu_custom_call.1} parent=43 // pred_region
        %s1049 = smul.u32 19, %s17
      $region48: #{tpu_custom_call.1} parent=43 // pred_fallthru
        _
    $region44: #{tpu_custom_call.1} parent=5 // pred_fallthru
      _
    %p1050 = scmp.le.s32.totalorder 2, %s12
    // Predicated region
    $region49: #{tpu_custom_call.1} parent=5 // pred_check
      %p1051 = pneg %p1050
    $region50: #{tpu_custom_call.1} parent=5 // pred_check_branch
      %1053 = sbr.rel (%p1051) target = $region52
    $region51: #{tpu_custom_call.1} parent=5 // pred_region
      %s1054 = ssub.s32 %s12, 2
      // Predicated region
      $region53: #{tpu_custom_call.1} parent=51 // pred_check
        %p1055 = pneg %p172
      $region54: #{tpu_custom_call.1} parent=51 // pred_check_branch
        %1057 = sbr.rel (%p1055) target = $region56
      $region55: #{tpu_custom_call.1} parent=51 // pred_region
        %s1058 = smul.u32 19, %s18
        %p1059 = scmp.lt.s32.totalorder %s1058, 37
        %s1060 = scalar_select %p1059, %s1058, 37
        %s1061 = smul.addr %s1060, 8
        %s1062 = scalar_lea.vmem %s6, %s1061
      $region56: #{tpu_custom_call.1} parent=51 // pred_fallthru
        _
    $region52: #{tpu_custom_call.1} parent=5 // pred_fallthru
      _
  $region6: #{tpu_custom_call.1} parent=0 // loop_footer
    %s16 = sadd.s32 1, %s12
  $region7: #{tpu_custom_call.1} parent=0 // loop_footer_branch
    %11 = sbr.rel target = $region3
  $region8: #{tpu_custom_call.1} parent=0 // loop_exit
    _

</llo_original>
